<compile_context>
chip_gen: v5e
topology: v5e:2x2
jax: 0.10.0
libtpu: 0.0.40
codegen_flags: <defaults>
</compile_context>

<pallas_src>
import jax
import jax.numpy as jnp
from jax.experimental import pallas as pl
from jax.experimental.pallas import tpu as pltpu

# ---- small synthetic sizes (original module: S=480, AL=600, AD=154, D=dim_model) ----
DIM_MODEL = 32          # D : text feature dim (dim_model)
ACOUSTIC_DIM = 16       # AD: acoustic feature dim == attention embed dim
ACOUSTIC_MAX_LEN = 16   # AL
SOURCE_MAX_LEN = 8      # S
BATCH = 2

# ---- packed parameter slab layout: row offsets rounded to multiples of 8, 128 lanes ----
SLAB_COLS = 128


def _r8(n: int) -> int:
    return ((n + 7) // 8) * 8


ROW_WAT = 0                                   # (S, AL)    acoustic_context_transform.weight
ROW_WCTX = ROW_WAT + _r8(SOURCE_MAX_LEN)      # (D, 2AD+2) [u_k; u_v; w2_k@u_k; w2_v@u_v]^T
ROW_QLAM = ROW_WCTX + _r8(DIM_MODEL)          # (AD, AD+2) [W_q; w1_k; w1_v]^T
ROW_WK = ROW_QLAM + _r8(ACOUSTIC_DIM)         # (AD, AD)   W_k^T
ROW_WV = ROW_WK + _r8(ACOUSTIC_DIM)           # (AD, AD)   W_v^T
ROW_OCD = ROW_WV + _r8(ACOUSTIC_DIM)          # (AD, D)    (correct_dim.W @ out_proj.W)^T
ROW_AGA = ROW_OCD + _r8(ACOUSTIC_DIM)         # (D, D)     acoustic_gate.W[:, :D]^T  (audio half)
ROW_AGT = ROW_AGA + _r8(DIM_MODEL)            # (D, D)     acoustic_gate.W[:, D:]^T  (text half)
ROW_BIAS = ROW_AGT + _r8(DIM_MODEL)           # (8, 128)   rows: bq, bk, bv, b_ocd, ag_b, ln_g, ln_b
SLAB_ROWS = ROW_BIAS + 8


def maf_ta_kernel(text_ref, actx_ref, slab_ref, out_ref):
    D, AD, AL, S = DIM_MODEL, ACOUSTIC_DIM, ACOUSTIC_MAX_LEN, SOURCE_MAX_LEN
    f32 = jnp.float32

    x = text_ref[...]                                             # (S, D)  this batch's text
    ac = actx_ref[...]                                            # (AL, AD) this batch's acoustic

    # ---- static slab slices (row offsets all 8-aligned -> free views) ----
    wat = slab_ref[ROW_WAT:ROW_WAT + S, 0:AL]                     # (S, AL)
    w_ctxT = slab_ref[ROW_WCTX:ROW_WCTX + D, 0:2 * AD + 2]        # (D, 2AD+2)
    w_qlT = slab_ref[ROW_QLAM:ROW_QLAM + AD, 0:AD + 2]            # (AD, AD+2)
    w_kT = slab_ref[ROW_WK:ROW_WK + AD, 0:AD]                     # (AD, AD)
    w_vT = slab_ref[ROW_WV:ROW_WV + AD, 0:AD]                     # (AD, AD)
    w_ocdT = slab_ref[ROW_OCD:ROW_OCD + AD, 0:D]                  # (AD, D)
    agA_T = slab_ref[ROW_AGA:ROW_AGA + D, 0:D]                    # (D, D)
    agT_T = slab_ref[ROW_AGT:ROW_AGT + D, 0:D]                    # (D, D)
    bias = slab_ref[ROW_BIAS:ROW_BIAS + 8, :]                     # (8, 128)
    bq, bk, bv = bias[0:1, 0:AD], bias[1:2, 0:AD], bias[2:3, 0:AD]
    b_ocd, ag_b = bias[3:4, 0:D], bias[4:5, 0:D]
    ln_g, ln_b = bias[5:6, 0:D], bias[6:7, 0:D]

    # acoustic length transform (permute -> Linear(AL->S) -> permute) == wat @ ac per batch
    a_tr = jnp.dot(wat, ac, preferred_element_type=f32)           # (S, AD)

    # one matmul: key/value context + folded lambda context terms
    ctx = jnp.dot(x, w_ctxT, preferred_element_type=f32)          # (S, 2AD+2)
    key_ctx, val_ctx = ctx[:, 0:AD], ctx[:, AD:2 * AD]
    lamk_c = ctx[:, 2 * AD:2 * AD + 1]
    lamv_c = ctx[:, 2 * AD + 1:2 * AD + 2]

    # one matmul: Q projection + folded w1_k / w1_v lambda terms
    qlam = jnp.dot(a_tr, w_qlT, preferred_element_type=f32)       # (S, AD+2)
    q = (qlam[:, 0:AD] + bq) * (AD ** -0.5)
    lam_k = jax.nn.sigmoid(qlam[:, AD:AD + 1] + lamk_c)
    lam_v = jax.nn.sigmoid(qlam[:, AD + 1:AD + 2] + lamv_c)

    k_cap = (1.0 - lam_k) * a_tr + lam_k * key_ctx
    v_cap = (1.0 - lam_v) * a_tr + lam_v * val_ctx

    # separate K / V projections (no stacked matmul, no discarded blocks)
    k = jnp.dot(k_cap, w_kT, preferred_element_type=f32) + bk     # (S, AD)
    v = jnp.dot(v_cap, w_vT, preferred_element_type=f32) + bv     # (S, AD)

    # single-head attention within this batch, exact softmax
    s = jnp.einsum('qa,ka->qk', q, k, preferred_element_type=f32)  # (S, S)
    s = s - jnp.max(s, axis=-1, keepdims=True)
    p = jnp.exp(s)
    p = p / jnp.sum(p, axis=-1, keepdims=True)
    attn = jnp.dot(p, v, preferred_element_type=f32)               # (S, AD)

    # fused out_proj + correct_dim (one matmul)
    audio = jnp.dot(attn, w_ocdT, preferred_element_type=f32) + b_ocd   # (S, D)

    # acoustic gate split into two matmuls (no lane-concat of [audio, text])
    w_a = jax.nn.sigmoid(jnp.dot(audio, agA_T, preferred_element_type=f32)
                         + jnp.dot(x, agT_T, preferred_element_type=f32) + ag_b)

    # residual + LayerNorm(eps=1e-5)
    y = x + w_a * audio
    mu = jnp.mean(y, axis=-1, keepdims=True)
    var = jnp.mean(jnp.square(y - mu), axis=-1, keepdims=True)
    out_ref[...] = (y - mu) * jax.lax.rsqrt(var + 1e-5) * ln_g + ln_b


def maf_ta_forward(text, acoustic_context, param_slab):
    """Batch is a parallel grid axis; each step computes its own batch's K/V locally."""
    B, S, D = text.shape
    AL, AD = acoustic_context.shape[1], acoustic_context.shape[2]
    text2 = text.reshape(B * S, D)                  # wrapper-side reshapes (layout plumbing)
    actx2 = acoustic_context.reshape(B * AL, AD)

    out = pl.pallas_call(
        maf_ta_kernel,
        out_shape=jax.ShapeDtypeStruct((B * S, D), jnp.float32),
        grid=(B,),
        in_specs=[
            pl.BlockSpec((S, D), lambda b: (b, 0)),
            pl.BlockSpec((AL, AD), lambda b: (b, 0)),
            # constant index_map -> slab is DMA'd once across all grid steps
            pl.BlockSpec((SLAB_ROWS, SLAB_COLS), lambda b: (0, 0)),
        ],
        out_specs=pl.BlockSpec((S, D), lambda b: (b, 0)),
        compiler_params=pltpu.CompilerParams(
            dimension_semantics=("parallel",),
            # toy-shape budget (slab ~88 KiB x2 + tiny activation blocks) with headroom;
            # recompute for production shapes.
            vmem_limit_bytes=8 * 1024 * 1024,
        ),
    )(text2, actx2, param_slab)
    return out.reshape(B, S, D)


# ---------------- raw parameters (PyTorch module layout) + one-time packing --------


def init_params(key):
    D, AD = DIM_MODEL, ACOUSTIC_DIM

    def nrm(k, shape, scale=0.1):
        return scale * jax.random.normal(k, shape, dtype=jnp.float32)

    ks = iter(jax.random.split(key, 20))
    p = {}
    p["act_w"] = nrm(next(ks), (SOURCE_MAX_LEN, ACOUSTIC_MAX_LEN))   # Linear(AL->S, no bias)
    p["u_k"] = nrm(next(ks), (AD, D))
    p["w1_k"] = nrm(next(ks), (1, AD))
    p["w2_k"] = nrm(next(ks), (1, AD))
    p["u_v"] = nrm(next(ks), (AD, D))
    p["w1_v"] = nrm(next(ks), (1, AD))
    p["w2_v"] = nrm(next(ks), (1, AD))
    p["in_w"] = nrm(next(ks), (3 * AD, AD))       # MultiheadAttention in_proj_weight
    p["in_b"] = nrm(next(ks), (3 * AD,), 0.05)    # in_proj_bias
    p["out_w"] = nrm(next(ks), (AD, AD))          # out_proj.weight
    p["out_b"] = nrm(next(ks), (AD,), 0.05)       # out_proj.bias
    p["cd_w"] = nrm(next(ks), (D, AD))            # correct_dim.weight
    p["cd_b"] = nrm(next(ks), (D,), 0.05)         # correct_dim.bias
    p["ag_w"] = nrm(next(ks), (D, 2 * D))         # acoustic_gate.weight
    p["ag_b"] = nrm(next(ks), (D,), 0.05)         # acoustic_gate.bias
    p["ln_g"] = 1.0 + nrm(next(ks), (D,), 0.1)    # final_layer_norm.weight
    p["ln_b"] = nrm(next(ks), (D,), 0.05)         # final_layer_norm.bias
    return p


def pack_params(p):
    """Algebraically fuse the module weights and pack them into one VMEM slab."""
    D, AD = DIM_MODEL, ACOUSTIC_DIM
    wq, wk, wv = p["in_w"][0:AD], p["in_w"][AD:2 * AD], p["in_w"][2 * AD:3 * AD]
    bq, bk, bv = p["in_b"][0:AD], p["in_b"][AD:2 * AD], p["in_b"][2 * AD:3 * AD]

    # exact algebraic rewrites of the module's linear layers
    w_ctx = jnp.concatenate([p["u_k"], p["u_v"],
                             p["w2_k"] @ p["u_k"], p["w2_v"] @ p["u_v"]], axis=0)  # (2AD+2, D)
    w_qlam = jnp.concatenate([wq, p["w1_k"], p["w1_v"]], axis=0)                   # (AD+2, AD)
    w_ocd = p["cd_w"] @ p["out_w"]                                                 # (D, AD)
    b_ocd = p["cd_w"] @ p["out_b"] + p["cd_b"]                                     # (D,)
    ag_audio = p["ag_w"][:, 0:D]                                                   # (D, D)
    ag_text = p["ag_w"][:, D:2 * D]                                                # (D, D)

    slab = jnp.zeros((SLAB_ROWS, SLAB_COLS), jnp.float32)

    def put(s, row, mat):
        r, c = mat.shape
        return s.at[row:row + r, 0:c].set(mat)

    slab = put(slab, ROW_WAT, p["act_w"])
    slab = put(slab, ROW_WCTX, w_ctx.T)
    slab = put(slab, ROW_QLAM, w_qlam.T)
    slab = put(slab, ROW_WK, wk.T)
    slab = put(slab, ROW_WV, wv.T)
    slab = put(slab, ROW_OCD, w_ocd.T)
    slab = put(slab, ROW_AGA, ag_audio.T)
    slab = put(slab, ROW_AGT, ag_text.T)

    bias = jnp.zeros((8, SLAB_COLS), jnp.float32)
    bias = bias.at[0, 0:AD].set(bq)
    bias = bias.at[1, 0:AD].set(bk)
    bias = bias.at[2, 0:AD].set(bv)
    bias = bias.at[3, 0:D].set(b_ocd)
    bias = bias.at[4, 0:D].set(p["ag_b"])
    bias = bias.at[5, 0:D].set(p["ln_g"])
    bias = bias.at[6, 0:D].set(p["ln_b"])
    slab = slab.at[ROW_BIAS:ROW_BIAS + 8, :].set(bias)
    return slab


# ------------- PyTorch-faithful pure-JAX reference (raw params, no fusion) ----------


def reference_forward(text, acoustic_context, p):
    D, AD = DIM_MODEL, ACOUSTIC_DIM
    # acoustic_context.permute(0,2,1) -> Linear(AL->S) -> permute(0,2,1)
    ac = jnp.transpose(acoustic_context, (0, 2, 1))               # (B, AD, AL)
    ac = jnp.einsum('bal,sl->bas', ac, p["act_w"])                # (B, AD, S)
    a_tr = jnp.transpose(ac, (0, 2, 1))                           # (B, S, AD)

    # ContextAwareAttention(q=k=v=a_tr, context=text)
    key_ctx = jnp.einsum('bsd,ad->bsa', text, p["u_k"])
    val_ctx = jnp.einsum('bsd,ad->bsa', text, p["u_v"])
    lam_k = jax.nn.sigmoid(jnp.einsum('bsa,oa->bso', a_tr, p["w1_k"])
                           + jnp.einsum('bsa,oa->bso', key_ctx, p["w2_k"]))
    lam_v = jax.nn.sigmoid(jnp.einsum('bsa,oa->bso', a_tr, p["w1_v"])
                           + jnp.einsum('bsa,oa->bso', val_ctx, p["w2_v"]))
    k_cap = (1.0 - lam_k) * a_tr + lam_k * key_ctx
    v_cap = (1.0 - lam_v) * a_tr + lam_v * val_ctx

    # nn.MultiheadAttention(embed_dim=AD, num_heads=1, batch_first=True), dropout=0
    wq, wk, wv = p["in_w"][0:AD], p["in_w"][AD:2 * AD], p["in_w"][2 * AD:3 * AD]
    bq, bk, bv = p["in_b"][0:AD], p["in_b"][AD:2 * AD], p["in_b"][2 * AD:3 * AD]
    q = jnp.einsum('bsa,na->bsn', a_tr, wq) + bq
    k = jnp.einsum('bsa,na->bsn', k_cap, wk) + bk
    v = jnp.einsum('bsa,na->bsn', v_cap, wv) + bv
    s = jnp.einsum('bqa,bka->bqk', q, k) * (AD ** -0.5)
    attn = jnp.einsum('bqk,bka->bqa', jax.nn.softmax(s, axis=-1), v)
    mha_out = jnp.einsum('bsa,na->bsn', attn, p["out_w"]) + p["out_b"]

    audio = jnp.einsum('bsa,da->bsd', mha_out, p["cd_w"]) + p["cd_b"]
    gate_in = jnp.concatenate([audio, text], axis=-1)
    w_a = jax.nn.sigmoid(jnp.einsum('bsc,dc->bsd', gate_in, p["ag_w"]) + p["ag_b"])

    y = text + w_a * audio
    mu = jnp.mean(y, axis=-1, keepdims=True)
    var = jnp.mean(jnp.square(y - mu), axis=-1, keepdims=True)
    return (y - mu) / jnp.sqrt(var + 1e-5) * p["ln_g"] + p["ln_b"]


if __name__ == "__main__":
    key = jax.random.PRNGKey(0)
    kp, kt, ka = jax.random.split(key, 3)
    params = init_params(kp)
    slab = pack_params(params)     # one-time parameter fusion + packing

    text = jax.random.normal(kt, (BATCH, SOURCE_MAX_LEN, DIM_MODEL), dtype=jnp.float32)
    actx = jax.random.normal(ka, (BATCH, ACOUSTIC_MAX_LEN, ACOUSTIC_DIM), dtype=jnp.float32)

    out = jax.block_until_ready(maf_ta_forward(text, actx, slab))
    ref = reference_forward(text, actx, params)

    assert out.shape == (BATCH, SOURCE_MAX_LEN, DIM_MODEL)
    if not jnp.allclose(out, ref, atol=2e-3, rtol=2e-3):
        err = float(jnp.max(jnp.abs(out - ref)))
        raise AssertionError(f"Pallas kernel mismatch vs PyTorch-faithful reference (max|diff|={err})")
    print("KERNEL_OK")
</pallas_src>

<mosaic_0001>
module attributes {stable_mosaic.version = 11 : i64} {
  func.func @maf_ta_kernel(%arg0: i32, %arg1: memref<8x32xf32, #tpu.memory_space<vmem>>, %arg2: memref<16x16xf32, #tpu.memory_space<vmem>>, %arg3: memref<176x128xf32, #tpu.memory_space<vmem>>, %arg4: memref<8x32xf32, #tpu.memory_space<vmem>>) attributes {dimension_semantics = [#tpu.dimension_semantics<parallel>], iteration_bounds = array<i64: 2>, scalar_prefetch = 0 : i64, scratch_operands = 0 : i64, tpu.core_type = #tpu.core_type<tc>, window_params = [{transform_indices = @transform_0, window_bounds = array<i64: 8, 32>}, {transform_indices = @transform_1, window_bounds = array<i64: 16, 16>}, {pipeline_mode = #tpu.pipeline_mode<synchronous>, transform_indices = @transform_2, window_bounds = array<i64: 176, 128>}, {transform_indices = @transform_3, window_bounds = array<i64: 8, 32>}]} {
    %c0 = arith.constant 0 : index
    %c0_0 = arith.constant 0 : index
    %0 = vector.load %arg1[%c0, %c0_0] : memref<8x32xf32, #tpu.memory_space<vmem>>, vector<8x32xf32>
    %c0_1 = arith.constant 0 : index
    %c0_2 = arith.constant 0 : index
    %1 = vector.load %arg2[%c0_1, %c0_2] : memref<16x16xf32, #tpu.memory_space<vmem>>, vector<16x16xf32>
    %c0_3 = arith.constant 0 : index
    %c0_4 = arith.constant 0 : index
    %2 = vector.load %arg3[%c0_3, %c0_4] : memref<176x128xf32, #tpu.memory_space<vmem>>, vector<8x16xf32>
    %c8 = arith.constant 8 : index
    %c0_5 = arith.constant 0 : index
    %3 = vector.load %arg3[%c8, %c0_5] : memref<176x128xf32, #tpu.memory_space<vmem>>, vector<32x34xf32>
    %c40 = arith.constant 40 : index
    %c0_6 = arith.constant 0 : index
    %4 = vector.load %arg3[%c40, %c0_6] : memref<176x128xf32, #tpu.memory_space<vmem>>, vector<16x18xf32>
    %c56 = arith.constant 56 : index
    %c0_7 = arith.constant 0 : index
    %5 = vector.load %arg3[%c56, %c0_7] : memref<176x128xf32, #tpu.memory_space<vmem>>, vector<16x16xf32>
    %c72 = arith.constant 72 : index
    %c0_8 = arith.constant 0 : index
    %6 = vector.load %arg3[%c72, %c0_8] : memref<176x128xf32, #tpu.memory_space<vmem>>, vector<16x16xf32>
    %c88 = arith.constant 88 : index
    %c0_9 = arith.constant 0 : index
    %7 = vector.load %arg3[%c88, %c0_9] : memref<176x128xf32, #tpu.memory_space<vmem>>, vector<16x32xf32>
    %c104 = arith.constant 104 : index
    %c0_10 = arith.constant 0 : index
    %8 = vector.load %arg3[%c104, %c0_10] : memref<176x128xf32, #tpu.memory_space<vmem>>, vector<32x32xf32>
    %c136 = arith.constant 136 : index
    %c0_11 = arith.constant 0 : index
    %9 = vector.load %arg3[%c136, %c0_11] : memref<176x128xf32, #tpu.memory_space<vmem>>, vector<32x32xf32>
    %c168 = arith.constant 168 : index
    %c0_12 = arith.constant 0 : index
    %10 = vector.load %arg3[%c168, %c0_12] : memref<176x128xf32, #tpu.memory_space<vmem>>, vector<8x128xf32>
    %11 = vector.extract_strided_slice %10 {offsets = [0, 0], sizes = [1, 16], strides = [1, 1]} : vector<8x128xf32> to vector<1x16xf32>
    %12 = vector.extract_strided_slice %10 {offsets = [1, 0], sizes = [1, 16], strides = [1, 1]} : vector<8x128xf32> to vector<1x16xf32>
    %13 = vector.extract_strided_slice %10 {offsets = [2, 0], sizes = [1, 16], strides = [1, 1]} : vector<8x128xf32> to vector<1x16xf32>
    %14 = vector.extract_strided_slice %10 {offsets = [3, 0], sizes = [1, 32], strides = [1, 1]} : vector<8x128xf32> to vector<1x32xf32>
    %15 = vector.extract_strided_slice %10 {offsets = [4, 0], sizes = [1, 32], strides = [1, 1]} : vector<8x128xf32> to vector<1x32xf32>
    %16 = vector.extract_strided_slice %10 {offsets = [5, 0], sizes = [1, 32], strides = [1, 1]} : vector<8x128xf32> to vector<1x32xf32>
    %17 = vector.extract_strided_slice %10 {offsets = [6, 0], sizes = [1, 32], strides = [1, 1]} : vector<8x128xf32> to vector<1x32xf32>
    %cst = arith.constant dense<0.000000e+00> : vector<8x16xf32>
    %18 = tpu.matmul %2, %1, %cst {dimension_numbers = #tpu.dot_dimension_numbers<[1], [0], [0], [1], [0, 0, 1, 1], [], []>} : vector<8x16xf32>, vector<16x16xf32>, vector<8x16xf32> -> vector<8x16xf32>
    %cst_13 = arith.constant dense<0.000000e+00> : vector<8x34xf32>
    %19 = tpu.matmul %0, %3, %cst_13 {dimension_numbers = #tpu.dot_dimension_numbers<[1], [0], [0], [1], [0, 0, 1, 1], [], []>} : vector<8x32xf32>, vector<32x34xf32>, vector<8x34xf32> -> vector<8x34xf32>
    %20 = vector.extract_strided_slice %19 {offsets = [0, 0], sizes = [8, 16], strides = [1, 1]} : vector<8x34xf32> to vector<8x16xf32>
    %21 = vector.extract_strided_slice %19 {offsets = [0, 16], sizes = [8, 16], strides = [1, 1]} : vector<8x34xf32> to vector<8x16xf32>
    %22 = vector.extract_strided_slice %19 {offsets = [0, 32], sizes = [8, 1], strides = [1, 1]} : vector<8x34xf32> to vector<8x1xf32>
    %23 = vector.extract_strided_slice %19 {offsets = [0, 33], sizes = [8, 1], strides = [1, 1]} : vector<8x34xf32> to vector<8x1xf32>
    %cst_14 = arith.constant dense<0.000000e+00> : vector<8x18xf32>
    %24 = tpu.matmul %18, %4, %cst_14 {dimension_numbers = #tpu.dot_dimension_numbers<[1], [0], [0], [1], [0, 0, 1, 1], [], []>} : vector<8x16xf32>, vector<16x18xf32>, vector<8x18xf32> -> vector<8x18xf32>
    %25 = vector.extract_strided_slice %24 {offsets = [0, 0], sizes = [8, 16], strides = [1, 1]} : vector<8x18xf32> to vector<8x16xf32>
    %26 = vector.broadcast %11 : vector<1x16xf32> to vector<8x16xf32>
    %27 = arith.addf %25, %26 : vector<8x16xf32>
    %cst_15 = arith.constant 2.500000e-01 : f32
    %28 = vector.broadcast %cst_15 : f32 to vector<8x16xf32>
    %29 = arith.mulf %27, %28 : vector<8x16xf32>
    %30 = vector.extract_strided_slice %24 {offsets = [0, 16], sizes = [8, 1], strides = [1, 1]} : vector<8x18xf32> to vector<8x1xf32>
    %31 = arith.addf %30, %22 : vector<8x1xf32>
    %32 = arith.negf %31 : vector<8x1xf32>
    %33 = math.exp %32 : vector<8x1xf32>
    %cst_16 = arith.constant 1.000000e+00 : f32
    %34 = vector.broadcast %cst_16 : f32 to vector<8x1xf32>
    %35 = arith.addf %34, %33 : vector<8x1xf32>
    %36 = arith.divf %34, %35 : vector<8x1xf32>
    %37 = vector.extract_strided_slice %24 {offsets = [0, 17], sizes = [8, 1], strides = [1, 1]} : vector<8x18xf32> to vector<8x1xf32>
    %38 = arith.addf %37, %23 : vector<8x1xf32>
    %39 = arith.negf %38 : vector<8x1xf32>
    %40 = math.exp %39 : vector<8x1xf32>
    %cst_17 = arith.constant 1.000000e+00 : f32
    %41 = vector.broadcast %cst_17 : f32 to vector<8x1xf32>
    %42 = arith.addf %41, %40 : vector<8x1xf32>
    %43 = arith.divf %41, %42 : vector<8x1xf32>
    %cst_18 = arith.constant 1.000000e+00 : f32
    %44 = vector.broadcast %cst_18 : f32 to vector<8x1xf32>
    %45 = arith.subf %44, %36 : vector<8x1xf32>
    %46 = vector.broadcast %45 : vector<8x1xf32> to vector<8x16xf32>
    %47 = arith.mulf %46, %18 : vector<8x16xf32>
    %48 = vector.broadcast %36 : vector<8x1xf32> to vector<8x16xf32>
    %49 = arith.mulf %48, %20 : vector<8x16xf32>
    %50 = arith.addf %47, %49 : vector<8x16xf32>
    %cst_19 = arith.constant 1.000000e+00 : f32
    %51 = vector.broadcast %cst_19 : f32 to vector<8x1xf32>
    %52 = arith.subf %51, %43 : vector<8x1xf32>
    %53 = vector.broadcast %52 : vector<8x1xf32> to vector<8x16xf32>
    %54 = arith.mulf %53, %18 : vector<8x16xf32>
    %55 = vector.broadcast %43 : vector<8x1xf32> to vector<8x16xf32>
    %56 = arith.mulf %55, %21 : vector<8x16xf32>
    %57 = arith.addf %54, %56 : vector<8x16xf32>
    %cst_20 = arith.constant dense<0.000000e+00> : vector<8x16xf32>
    %58 = tpu.matmul %50, %5, %cst_20 {dimension_numbers = #tpu.dot_dimension_numbers<[1], [0], [0], [1], [0, 0, 1, 1], [], []>} : vector<8x16xf32>, vector<16x16xf32>, vector<8x16xf32> -> vector<8x16xf32>
    %59 = vector.broadcast %12 : vector<1x16xf32> to vector<8x16xf32>
    %60 = arith.addf %58, %59 : vector<8x16xf32>
    %cst_21 = arith.constant dense<0.000000e+00> : vector<8x16xf32>
    %61 = tpu.matmul %57, %6, %cst_21 {dimension_numbers = #tpu.dot_dimension_numbers<[1], [0], [0], [1], [0, 0, 1, 1], [], []>} : vector<8x16xf32>, vector<16x16xf32>, vector<8x16xf32> -> vector<8x16xf32>
    %62 = vector.broadcast %13 : vector<1x16xf32> to vector<8x16xf32>
    %63 = arith.addf %61, %62 : vector<8x16xf32>
    "tpu.trace_start"() <{level = 10 : i32, message = "qa,ka->qk"}> : () -> ()
    %cst_22 = arith.constant dense<0.000000e+00> : vector<8x8xf32>
    %64 = tpu.matmul %29, %60, %cst_22 {dimension_numbers = #tpu.dot_dimension_numbers<[1], [1], [0], [0], [0, 0, 1, 0], [], []>} : vector<8x16xf32>, vector<8x16xf32>, vector<8x8xf32> -> vector<8x8xf32>
    "tpu.trace_stop"() : () -> ()
    %cst_23 = arith.constant dense<0xFF800000> : vector<8xf32>
    %65 = vector.multi_reduction <maximumf>, %64, %cst_23 [1] : vector<8x8xf32> to vector<8xf32>
    %66 = vector.shape_cast %65 : vector<8xf32> to vector<8x1xf32>
    %67 = vector.broadcast %66 : vector<8x1xf32> to vector<8x8xf32>
    %68 = arith.subf %64, %67 : vector<8x8xf32>
    %69 = math.exp %68 : vector<8x8xf32>
    %cst_24 = arith.constant dense<0.000000e+00> : vector<8xf32>
    %70 = vector.multi_reduction <add>, %69, %cst_24 [1] : vector<8x8xf32> to vector<8xf32>
    %71 = vector.shape_cast %70 : vector<8xf32> to vector<8x1xf32>
    %72 = vector.broadcast %71 : vector<8x1xf32> to vector<8x8xf32>
    %73 = arith.divf %69, %72 : vector<8x8xf32>
    %cst_25 = arith.constant dense<0.000000e+00> : vector<8x16xf32>
    %74 = tpu.matmul %73, %63, %cst_25 {dimension_numbers = #tpu.dot_dimension_numbers<[1], [0], [0], [1], [0, 0, 1, 1], [], []>} : vector<8x8xf32>, vector<8x16xf32>, vector<8x16xf32> -> vector<8x16xf32>
    %cst_26 = arith.constant dense<0.000000e+00> : vector<8x32xf32>
    %75 = tpu.matmul %74, %7, %cst_26 {dimension_numbers = #tpu.dot_dimension_numbers<[1], [0], [0], [1], [0, 0, 1, 1], [], []>} : vector<8x16xf32>, vector<16x32xf32>, vector<8x32xf32> -> vector<8x32xf32>
    %76 = vector.broadcast %14 : vector<1x32xf32> to vector<8x32xf32>
    %77 = arith.addf %75, %76 : vector<8x32xf32>
    %cst_27 = arith.constant dense<0.000000e+00> : vector<8x32xf32>
    %78 = tpu.matmul %77, %8, %cst_27 {dimension_numbers = #tpu.dot_dimension_numbers<[1], [0], [0], [1], [0, 0, 1, 1], [], []>} : vector<8x32xf32>, vector<32x32xf32>, vector<8x32xf32> -> vector<8x32xf32>
    %cst_28 = arith.constant dense<0.000000e+00> : vector<8x32xf32>
    %79 = tpu.matmul %0, %9, %cst_28 {dimension_numbers = #tpu.dot_dimension_numbers<[1], [0], [0], [1], [0, 0, 1, 1], [], []>} : vector<8x32xf32>, vector<32x32xf32>, vector<8x32xf32> -> vector<8x32xf32>
    %80 = arith.addf %78, %79 : vector<8x32xf32>
    %81 = vector.broadcast %15 : vector<1x32xf32> to vector<8x32xf32>
    %82 = arith.addf %80, %81 : vector<8x32xf32>
    %83 = arith.negf %82 : vector<8x32xf32>
    %84 = math.exp %83 : vector<8x32xf32>
    %cst_29 = arith.constant 1.000000e+00 : f32
    %85 = vector.broadcast %cst_29 : f32 to vector<8x32xf32>
    %86 = arith.addf %85, %84 : vector<8x32xf32>
    %87 = arith.divf %85, %86 : vector<8x32xf32>
    %88 = arith.mulf %87, %77 : vector<8x32xf32>
    %89 = arith.addf %0, %88 : vector<8x32xf32>
    %cst_30 = arith.constant dense<0.000000e+00> : vector<8xf32>
    %90 = vector.multi_reduction <add>, %89, %cst_30 [1] : vector<8x32xf32> to vector<8xf32>
    %91 = vector.shape_cast %90 : vector<8xf32> to vector<8x1xf32>
    %cst_31 = arith.constant 3.200000e+01 : f32
    %92 = vector.broadcast %cst_31 : f32 to vector<8x1xf32>
    %93 = arith.divf %91, %92 : vector<8x1xf32>
    %94 = vector.broadcast %93 : vector<8x1xf32> to vector<8x32xf32>
    %95 = arith.subf %89, %94 : vector<8x32xf32>
    %96 = arith.mulf %95, %95 : vector<8x32xf32>
    %cst_32 = arith.constant dense<0.000000e+00> : vector<8xf32>
    %97 = vector.multi_reduction <add>, %96, %cst_32 [1] : vector<8x32xf32> to vector<8xf32>
    %98 = vector.shape_cast %97 : vector<8xf32> to vector<8x1xf32>
    %cst_33 = arith.constant 3.200000e+01 : f32
    %99 = vector.broadcast %cst_33 : f32 to vector<8x1xf32>
    %100 = arith.divf %98, %99 : vector<8x1xf32>
    %101 = vector.broadcast %93 : vector<8x1xf32> to vector<8x32xf32>
    %102 = arith.subf %89, %101 : vector<8x32xf32>
    %cst_34 = arith.constant 9.99999974E-6 : f32
    %103 = vector.broadcast %cst_34 : f32 to vector<8x1xf32>
    %104 = arith.addf %100, %103 : vector<8x1xf32>
    %105 = math.rsqrt %104 : vector<8x1xf32>
    %106 = vector.broadcast %105 : vector<8x1xf32> to vector<8x32xf32>
    %107 = arith.mulf %102, %106 : vector<8x32xf32>
    %108 = vector.broadcast %16 : vector<1x32xf32> to vector<8x32xf32>
    %109 = arith.mulf %107, %108 : vector<8x32xf32>
    %110 = vector.broadcast %17 : vector<1x32xf32> to vector<8x32xf32>
    %111 = arith.addf %109, %110 : vector<8x32xf32>
    %c0_35 = arith.constant 0 : index
    %c0_36 = arith.constant 0 : index
    %112 = vector.load %arg4[%c0_35, %c0_36] : memref<8x32xf32, #tpu.memory_space<vmem>>, vector<8x32xf32>
    tpu.vector_store %arg4[%c0_35, %c0_36], %111 {strides = array<i32>} : memref<8x32xf32, #tpu.memory_space<vmem>>, vector<8x32xf32>,
    return
  }
  func.func @transform_0(%arg0: i32) -> (i32, i32) {
    %c0_i32 = arith.constant 0 : i32
    %c0_i32_0 = arith.constant 0 : i32
    return %arg0, %c0_i32 : i32, i32
  }
  func.func @transform_1(%arg0: i32) -> (i32, i32) {
    %c0_i32 = arith.constant 0 : i32
    %c0_i32_0 = arith.constant 0 : i32
    return %arg0, %c0_i32 : i32, i32
  }
  func.func @transform_2(%arg0: i32) -> (i32, i32) {
    %c0_i32 = arith.constant 0 : i32
    %c0_i32_0 = arith.constant 0 : i32
    %c0_i32_1 = arith.constant 0 : i32
    return %c0_i32, %c0_i32_0 : i32, i32
  }
  func.func @transform_3(%arg0: i32) -> (i32, i32) {
    %c0_i32 = arith.constant 0 : i32
    %c0_i32_0 = arith.constant 0 : i32
    return %arg0, %c0_i32 : i32, i32
  }
}

</mosaic_0001>

<llo_original>
// kernel: tpu_custom_call.1
$region0: #{tpu_custom_call.1}
  #allocation0 [shape = 'u32[]', space=smem, size = 0x4, offset = 0x4, fixed_abs, tag = 'smem constant byte address 0x4 - core index']
  #allocation1 [shape = 'u32[72,128]{1,0:T(1,128)}', space=vmem, size = 0x9000, scoped, tag = 'internal scratch']
  %s0 = inlined_call_operand.vmem [shape: f32[16,32], index: 0, kind: input, shape index: {}]
  %s1 = inlined_call_operand.vmem [shape: f32[32,16], index: 1, kind: input, shape index: {}]
  %s2 = inlined_call_operand.hbm [shape: f32[176,128], index: 2, kind: input, shape index: {}]
  %s3 = inlined_call_operand.hbm [shape: f32[16,32], index: 3, kind: output, shape index: {}]
  %s4 = sld [smem:[#allocation0]]
  $region49: #{tpu_custom_call.1} parent=0
    _
  %s6 = ssub.s32 1, %s4
  %s7 = scalar_select 0, %s6, %s4
  $region1: #{tpu_custom_call.1} parent=0
    #allocation2 [shape = 'u8[90112]{0}', space=vmem, size = 0x16000, scoped, tag = 'input window, operand 2, single buffered']
    #allocation3 [shape = 's32[2]{0}', space=sflag, size = 0x8, scoped, tag = 'scoped memory for tpu_custom_call.1']
    #allocation4 [shape = 's32[2]{0}', space=sflag, size = 0x8, scoped, tag = 'scoped memory for tpu_custom_call.1']
    #allocation5 [shape = 'u8[8192]{0}', space=vmem, size = 0x2000, scoped, tag = 'output window, operand 0']
    %8 = vsyncpa [#allocation3], 0
    %9 = vsyncpa [#allocation4], 0
    %s10 = scalar_lea.sflag [#allocation4], 1
    %11 = vsyncpa %s10, 0
    loop: start=0, step=1, limit=4
    $region2: #{tpu_custom_call.1} parent=1 // loop_pre_header
      _
    $region3: #{tpu_custom_call.1} parent=1 // loop_header
      %s13 = sphi 0, %s17
      %p14 = scmp.ge.s32.totalorder %s13, 4
      %s23 = sphi 0, %s25
      %s26 = sphi 0, %s23
      %s27 = sphi 0, %s26
      %s43 = sphi 0, %s27
      %s49 = sphi 0, %s51
      %s52 = sphi 0, %s49
      %s53 = sphi 0, %s52
      %s69 = sphi 0, %s53
      %s73 = sphi 0, %s73
      %s75 = sphi 0, %s73
      %s76 = sphi 0, %s75
      %s90 = sphi 0, %s76
      %s96 = sphi 0, %s98
      %s99 = sphi 0, %s96
      %s100 = sphi 0, %s99
      %s116 = sphi 0, %s100
    $region4: #{tpu_custom_call.1} parent=1 // loop_header_branch
      %16 = sbr.rel (%p14) target = $region8
    $region5: #{tpu_custom_call.1} parent=1 // loop_body
      %s18 = ssub.s32 %s13, 1
      %s19 = ssub.s32 %s13, 2
      %s20 = sadd.s32 %s13, 1
      %s21 = ssub.s32 %s13, %s20
      %p22 = scmp.eq.s32.totalorder %s21, 0
      %s24 = sadd.s32 %s23, 1
      %s25 = scalar_select %p22, %s23, %s24
      %p28 = pneg %p22
      %p29 = scmp.eq.s32.totalorder %s13, 1
      %p30 = por %p28, %p29
      %p31 = scmp.ne.s32.totalorder %s23, %s26
      %p32 = scmp.eq.s32.totalorder %s13, 0
      %p33 = por %p31, %p32
      %p34 = scmp.ne.s32.totalorder %s23, %s26
      %p35 = scmp.eq.s32.totalorder %s18, 1
      %p36 = por %p34, %p35
      %p37 = scmp.ne.s32.totalorder %s26, %s27
      %p38 = scmp.eq.s32.totalorder %s18, 0
      %p39 = por %p37, %p38
      %p40 = scmp.ne.s32.totalorder %s26, %s27
      %p41 = scmp.eq.s32.totalorder %s19, 1
      %p42 = por %p40, %p41
      %p44 = scmp.ne.s32.totalorder %s27, %s43
      %p45 = scmp.eq.s32.totalorder %s19, 0
      %p46 = por %p44, %p45
      %s47 = ssub.s32 %s13, %s20
      %p48 = scmp.eq.s32.totalorder %s47, 0
      %s50 = sadd.s32 %s49, 1
      %s51 = scalar_select %p48, %s49, %s50
      %p54 = pneg %p48
      %p55 = scmp.eq.s32.totalorder %s13, 1
      %p56 = por %p54, %p55
      %p57 = scmp.ne.s32.totalorder %s49, %s52
      %p58 = scmp.eq.s32.totalorder %s13, 0
      %p59 = por %p57, %p58
      %p60 = scmp.ne.s32.totalorder %s49, %s52
      %p61 = scmp.eq.s32.totalorder %s18, 1
      %p62 = por %p60, %p61
      %p63 = scmp.ne.s32.totalorder %s52, %s53
      %p64 = scmp.eq.s32.totalorder %s18, 0
      %p65 = por %p63, %p64
      %p66 = scmp.ne.s32.totalorder %s52, %s53
      %p67 = scmp.eq.s32.totalorder %s19, 1
      %p68 = por %p66, %p67
      %p70 = scmp.ne.s32.totalorder %s53, %s69
      %p71 = scmp.eq.s32.totalorder %s19, 0
      %p72 = por %p70, %p71
      %s74 = sadd.s32 %s73, 1
      %p77 = scmp.eq.s32.totalorder %s13, 1
      %p78 = scmp.ne.s32.totalorder %s73, %s75
      %p79 = scmp.eq.s32.totalorder %s13, 0
      %p80 = por %p78, %p79
      %p81 = scmp.ne.s32.totalorder %s73, %s75
      %p82 = scmp.eq.s32.totalorder %s18, 1
      %p83 = por %p81, %p82
      %p84 = scmp.ne.s32.totalorder %s75, %s76
      %p85 = scmp.eq.s32.totalorder %s18, 0
      %p86 = por %p84, %p85
      %p87 = scmp.ne.s32.totalorder %s75, %s76
      %p88 = scmp.eq.s32.totalorder %s19, 1
      %p89 = por %p87, %p88
      %p91 = scmp.ne.s32.totalorder %s76, %s90
      %p92 = scmp.eq.s32.totalorder %s19, 0
      %p93 = por %p91, %p92
      %s94 = ssub.s32 %s13, %s20
      %p95 = scmp.eq.s32.totalorder %s94, 0
      %s97 = sadd.s32 %s96, 1
      %s98 = scalar_select %p95, %s96, %s97
      %p101 = pneg %p95
      %p102 = scmp.eq.s32.totalorder %s13, 1
      %p103 = por %p101, %p102
      %p104 = scmp.ne.s32.totalorder %s96, %s99
      %p105 = scmp.eq.s32.totalorder %s13, 0
      %p106 = por %p104, %p105
      %p107 = scmp.ne.s32.totalorder %s96, %s99
      %p108 = scmp.eq.s32.totalorder %s18, 1
      %p109 = por %p107, %p108
      %p110 = scmp.ne.s32.totalorder %s99, %s100
      %p111 = scmp.eq.s32.totalorder %s18, 0
      %p112 = por %p110, %p111
      %p113 = scmp.ne.s32.totalorder %s99, %s100
      %p114 = scmp.eq.s32.totalorder %s19, 1
      %p115 = por %p113, %p114
      %p117 = scmp.ne.s32.totalorder %s100, %s116
      %p118 = scmp.eq.s32.totalorder %s19, 0
      %p119 = por %p117, %p118
      %p120 = scmp.le.s32.totalorder 1, %s13
      %p121 = scmp.lt.s32.totalorder %s13, 3
      %p122 = pnand %p120, %p121
      %p123 = pneg %p122
      // Predicated region
      $region9: #{tpu_custom_call.1} parent=5 // pred_check
        _
      $region10: #{tpu_custom_call.1} parent=5 // pred_check_branch
        %125 = sbr.rel (%p122) target = $region12
      $region11: #{tpu_custom_call.1} parent=5 // pred_region
        %s126 = ssub.s32 %s13, 1
        // Predicated region
        $region13: #{tpu_custom_call.1} parent=11 // pred_check
          %p127 = pneg %p86
        $region14: #{tpu_custom_call.1} parent=11 // pred_check_branch
          %129 = sbr.rel (%p127) target = $region16
        $region15: #{tpu_custom_call.1} parent=11 // pred_region
          %131 = vsyncadd [#allocation3], 0
          %s132 = sshll.u32 %s2, 4
          %s133 = int_to_ptr.hbm [resolvable:$true] %s132
          %s134 = sshll.u32 [#allocation2], 4
          %s135 = int_to_ptr.vmem [resolvable:$true] %s134
          %140 = dma.hbm_to_vmem [thread:$0]  %s133, 2816, %s135, [#allocation3], 128, 128, 8
        $region16: #{tpu_custom_call.1} parent=11 // pred_fallthru
          _
      $region12: #{tpu_custom_call.1} parent=5 // pred_fallthru
        _
      %p141 = scmp.lt.s32.totalorder %s13, 2
      // Predicated region
      $region17: #{tpu_custom_call.1} parent=5 // pred_check
        %p142 = pneg %p141
      $region18: #{tpu_custom_call.1} parent=5 // pred_check_branch
        %144 = sbr.rel (%p142) target = $region20
      $region19: #{tpu_custom_call.1} parent=5 // pred_region
        // Predicated region
        $region21: #{tpu_custom_call.1} parent=19 // pred_check
          %p145 = pneg %p33
        $region22: #{tpu_custom_call.1} parent=19 // pred_check_branch
          %147 = sbr.rel (%p145) target = $region24
        $region23: #{tpu_custom_call.1} parent=19 // pred_region
          %p148 = scmp.lt.s32.totalorder %s13, 1
          %s149 = scalar_select %p148, %s13, 1
          %s150 = smul.addr %s149, 8
          %s151 = scalar_lea.vmem %s0, %s150
        $region24: #{tpu_custom_call.1} parent=19 // pred_fallthru
          _
        // Predicated region
        $region25: #{tpu_custom_call.1} parent=19 // pred_check
          %p152 = pneg %p59
        $region26: #{tpu_custom_call.1} parent=19 // pred_check_branch
          %154 = sbr.rel (%p152) target = $region28
        $region27: #{tpu_custom_call.1} parent=19 // pred_region
          %s155 = smul.u32 2, %s13
          %p156 = scmp.lt.s32.totalorder %s155, 3
          %s157 = scalar_select %p156, %s155, 3
          %s158 = smul.addr %s157, 8
          %s159 = scalar_lea.vmem %s1, %s158
          %s160 = smul.u32 2, %s13
        $region28: #{tpu_custom_call.1} parent=19 // pred_fallthru
          _
      $region20: #{tpu_custom_call.1} parent=5 // pred_fallthru
        _
      %p161 = scmp.le.s32.totalorder 1, %s13
      %p162 = scmp.lt.s32.totalorder %s13, 3
      %p163 = pnand %p161, %p162
      %p164 = pneg %p163
      // Predicated region
      $region29: #{tpu_custom_call.1} parent=5 // pred_check
        _
      $region30: #{tpu_custom_call.1} parent=5 // pred_check_branch
        %166 = sbr.rel (%p163) target = $region32
      $region31: #{tpu_custom_call.1} parent=5 // pred_region
        %s167 = ssub.s32 %s13, 1
        // Predicated region
        $region33: #{tpu_custom_call.1} parent=31 // pred_check
          %p168 = pneg %p86
        $region34: #{tpu_custom_call.1} parent=31 // pred_check_branch
          %170 = sbr.rel (%p168) target = $region36
        $region35: #{tpu_custom_call.1} parent=31 // pred_region
          %172 = dma.done [#allocation3], 2816
        $region36: #{tpu_custom_call.1} parent=31 // pred_fallthru
          _
        %p173 = scmp.lt.s32.totalorder %s18, 1
        %s174 = scalar_select %p173, %s18, 1
        %s175 = smul.addr %s174, 8
        %s176 = scalar_lea.vmem %s0, %s175
        %p177 = pneg %p39
        %p178 = pneg %p36
        %s179 = smul.u32 2, %s18
        %p180 = scmp.lt.s32.totalorder %s179, 3
        %s181 = scalar_select %p180, %s179, 3
        %s182 = smul.addr %s181, 8
        %s183 = scalar_lea.vmem %s1, %s182
        %p184 = pneg %p65
        %p185 = pneg %p62
        %p186 = pneg %p86
        %p187 = pneg %p83
        %p188 = pneg %p112
        %p189 = pneg %p109
        %s190 = sand.u32 %s99, 1
        %s191 = scalar_lea.sflag [#allocation4], %s190
        %s192 = sand.u32 %s99, 1
        %s193 = smul.addr %s192, 8
        %s194 = scalar_lea.vmem [#allocation5], %s193
        %p195 = scmp.lt.s32.totalorder %s18, 1
        %s196 = scalar_select %p195, %s18, 1
        %s197 = smul.addr %s196, 8
        %s198 = scalar_lea.vmem %s0, %s197
        %s199 = smul.u32 2, %s18
        %p200 = scmp.lt.s32.totalorder %s199, 3
        %s201 = scalar_select %p200, %s199, 3
        %s202 = smul.addr %s201, 8
        %s203 = scalar_lea.vmem %s1, %s202
        %s204 = smul.u32 2, %s18
        %v205 = vld [vmem:[%s198] sm:$0xff]
        %v206 = vld [vmem:[%s203] sm:$0xff]
        %v207 = vld [vmem:[%s203 + $0x8] sm:$0xff]
        %v208 = vld [vmem:[#allocation2] sm:$0xff]
        %v209 = vld [vmem:[#allocation2 + $0x8] sm:$0xff]
        %v210 = vld [vmem:[#allocation2 + $0x10] sm:$0xff]
        %v211 = vld [vmem:[#allocation2 + $0x18] sm:$0xff]
        %v212 = vld [vmem:[#allocation2 + $0x20] sm:$0xff]
        %v213 = vld [vmem:[#allocation2 + $0x28] sm:$0xff]
        %v214 = vld [vmem:[#allocation2 + $0x30] sm:$0xff]
        %v215 = vld [vmem:[#allocation2 + $0x38] sm:$0xff]
        %v216 = vld [vmem:[#allocation2 + $0x40] sm:$0xff]
        %v217 = vld [vmem:[#allocation2 + $0x48] sm:$0xff]
        %v218 = vld [vmem:[#allocation2 + $0x50] sm:$0xff]
        %v219 = vld [vmem:[#allocation2 + $0x58] sm:$0xff]
        %v220 = vld [vmem:[#allocation2 + $0x60] sm:$0xff]
        %v221 = vld [vmem:[#allocation2 + $0x68] sm:$0xff]
        %v222 = vld [vmem:[#allocation2 + $0x70] sm:$0xff]
        %v223 = vld [vmem:[#allocation2 + $0x78] sm:$0xff]
        %v224 = vld [vmem:[#allocation2 + $0x80] sm:$0xff]
        %v225 = vld [vmem:[#allocation2 + $0x88] sm:$0xff]
        %v226 = vld [vmem:[#allocation2 + $0x90] sm:$0xff]
        %v227 = vld [vmem:[#allocation2 + $0x98] sm:$0xff]
        %v228 = vld [vmem:[#allocation2 + $0xa0] sm:$0xff]
        %v229 = vld [vmem:[#allocation2 + $0xa8] sm:$0xff]
        %vm230 = vcmask 130048
        %v232 = vsel %vm230, %v208, 0
        %234 = vmatpush.msra.mxu0 0.0
        %235 = vmatpush.msra.mxu0 0.0
        %236 = vmatpush.msra.mxu0 0.0
        %237 = vmatpush.msra.mxu0 0.0
        %238 = vmatpush.msra.mxu0 0.0
        %239 = vmatpush.msra.mxu0 0.0
        %240 = vmatpush.msra.mxu0 0.0
        %241 = vmatpush.msra.mxu0 0.0
        %242 = vmatpush.msra.mxu0 0.0
        %243 = vmatpush.msra.mxu0 0.0
        %244 = vmatpush.msra.mxu0 0.0
        %245 = vmatpush.msra.mxu0 0.0
        %246 = vmatpush.msra.mxu0 0.0
        %247 = vmatpush.msra.mxu0 0.0
        %248 = vmatpush.msra.mxu0 %v207
        %249 = vmatpush.msra.mxu0 %v206
        %250 = vmatmul.f32.gmra.mxu0 %v232
        %v251 = vpop.f32.mrf.mxu0
        %v252 = vadd.f32 0.0, %v251
        %253 = vdwg.mxu0
        %vm254 = vcmask 261120
        %v256 = vsel %vm254, %v205, 0
        %258 = vmatpush.msra.mxu0 0.0
        %259 = vmatpush.msra.mxu0 0.0
        %260 = vmatpush.msra.mxu0 0.0
        %261 = vmatpush.msra.mxu0 0.0
        %262 = vmatpush.msra.mxu0 0.0
        %263 = vmatpush.msra.mxu0 0.0
        %264 = vmatpush.msra.mxu0 0.0
        %265 = vmatpush.msra.mxu0 0.0
        %266 = vmatpush.msra.mxu0 0.0
        %267 = vmatpush.msra.mxu0 0.0
        %268 = vmatpush.msra.mxu0 0.0
        %269 = vmatpush.msra.mxu0 0.0
        %270 = vmatpush.msra.mxu0 %v212
        %271 = vmatpush.msra.mxu0 %v211
        %272 = vmatpush.msra.mxu0 %v210
        %273 = vmatpush.msra.mxu0 %v209
        %274 = vmatmul.f32.gmra.mxu0 %v256
        %v275 = vpop.f32.mrf.mxu0
        %v276 = vadd.f32 0.0, %v275
        %277 = vdwg.mxu0
        %v279 = vsel %vm230, %v252, 0
        %281 = vmatpush.msra.mxu0 0.0
        %282 = vmatpush.msra.mxu0 0.0
        %283 = vmatpush.msra.mxu0 0.0
        %284 = vmatpush.msra.mxu0 0.0
        %285 = vmatpush.msra.mxu0 0.0
        %286 = vmatpush.msra.mxu0 0.0
        %287 = vmatpush.msra.mxu0 0.0
        %288 = vmatpush.msra.mxu0 0.0
        %289 = vmatpush.msra.mxu0 0.0
        %290 = vmatpush.msra.mxu0 0.0
        %291 = vmatpush.msra.mxu0 0.0
        %292 = vmatpush.msra.mxu0 0.0
        %293 = vmatpush.msra.mxu0 0.0
        %294 = vmatpush.msra.mxu0 0.0
        %295 = vmatpush.msra.mxu0 %v214
        %296 = vmatpush.msra.mxu0 %v213
        %297 = vmatmul.f32.gmra.mxu0 %v279
        %v298 = vpop.f32.mrf.mxu0
        %v299 = vadd.f32 0.0, %v298
        %300 = vdwg.mxu0
        %v301 = vperm.slane %v229, 0
        %v302 = vadd.f32 %v299, %v301
        %v303 = vmul.f32 %v302, 0.25
        %305 = vrot.lane.b32.xlu0 %v276, 112
        %v306 = vpop.permute.xlu0 %305
        %v308 = vadd.f32 %v299, %v306
        %v309 = vxor.u32 %v308, 2147483648
        %v310 = vmul.f32 %v309, 1.442695
        %v311 = vpow.pop %v310
        %v312 = vadd.f32 %v311, 1.0
        %v313 = vrcp.pop %v312
        %v314 = vmul.f32 %v312, %v313
        %v315 = vsub.f32 1.0, %v314
        %v316 = vmul.f32 %v313, %v315
        %v317 = vadd.f32 %v313, %v316
        %vm318 = vweird.f32 %v312
        %vm319 = vweird.f32 %v313
        %vm320 = vmor %vm318, %vm319
        %v321 = vsel %vm320, %v313, %v317
        %v322 = vand.u32 2147483647, %v312
        %vm323 = vcmp.eq.f32.partialorder %v322, 8.507059e+37
        %v324 = vand.u32 %v312, 2147483648
        %v325 = vor.u32 1.1754944e-38, %v324
        %v326 = vsel %vm323, %v325, %v321
        %v327 = vmul.f32 1.0, %v326
        %v328 = vsub.f32 1.0, %v327
        %330 = vset.pattern.permute.xlu0 16
        %331 = vperm.xlu0 %330, %v328
        %v332 = vpop.permute.xlu0 %331
        %v334 = vmul.f32 %v332, %v252
        %336 = vset.pattern.permute.xlu0 16
        %337 = vperm.xlu0 %336, %v327
        %v338 = vpop.permute.xlu0 %337
        %v340 = vmul.f32 %v338, %v276
        %v341 = vadd.f32 %v334, %v340
        %342 = vset.pattern.permute.xlu0 17
        %343 = vperm.xlu0 %342, %v328
        %v344 = vpop.permute.xlu0 %343
        %v346 = vmul.f32 %v344, %v252
        %347 = vset.pattern.permute.xlu0 17
        %348 = vperm.xlu0 %347, %v327
        %v349 = vpop.permute.xlu0 %348
        %v351 = vmul.f32 %v349, %v276
        %353 = vrot.lane.b32.xlu0 %v351, 112
        %v354 = vpop.permute.xlu0 %353
        %v356 = vadd.f32 %v346, %v354
        %v357 = vperm.slane %v229, 1
        %v359 = vsel %vm230, %v341, 0
        %361 = vmatpush.msra.mxu0 0.0
        %362 = vmatpush.msra.mxu0 0.0
        %363 = vmatpush.msra.mxu0 0.0
        %364 = vmatpush.msra.mxu0 0.0
        %365 = vmatpush.msra.mxu0 0.0
        %366 = vmatpush.msra.mxu0 0.0
        %367 = vmatpush.msra.mxu0 0.0
        %368 = vmatpush.msra.mxu0 0.0
        %369 = vmatpush.msra.mxu0 0.0
        %370 = vmatpush.msra.mxu0 0.0
        %371 = vmatpush.msra.mxu0 0.0
        %372 = vmatpush.msra.mxu0 0.0
        %373 = vmatpush.msra.mxu0 0.0
        %374 = vmatpush.msra.mxu0 0.0
        %375 = vmatpush.msra.mxu0 %v216
        %376 = vmatpush.msra.mxu0 %v215
        %377 = vmatmul.f32.gmra.mxu0 %v359
        %v378 = vpop.f32.mrf.mxu0
        %v379 = vadd.f32 %v357, %v378
        %380 = vdwg.mxu0
        %v381 = vperm.slane %v229, 2
        %v383 = vsel %vm230, %v356, 0
        %385 = vmatpush.msra.mxu0 0.0
        %386 = vmatpush.msra.mxu0 0.0
        %387 = vmatpush.msra.mxu0 0.0
        %388 = vmatpush.msra.mxu0 0.0
        %389 = vmatpush.msra.mxu0 0.0
        %390 = vmatpush.msra.mxu0 0.0
        %391 = vmatpush.msra.mxu0 0.0
        %392 = vmatpush.msra.mxu0 0.0
        %393 = vmatpush.msra.mxu0 0.0
        %394 = vmatpush.msra.mxu0 0.0
        %395 = vmatpush.msra.mxu0 0.0
        %396 = vmatpush.msra.mxu0 0.0
        %397 = vmatpush.msra.mxu0 0.0
        %398 = vmatpush.msra.mxu0 0.0
        %399 = vmatpush.msra.mxu0 %v218
        %400 = vmatpush.msra.mxu0 %v217
        %401 = vmatmul.f32.gmra.mxu0 %v383
        %v402 = vpop.f32.mrf.mxu0
        %v403 = vadd.f32 %v381, %v402
        %404 = vdwg.mxu0
        %v406 = vsel %vm230, %v303, 0
        %v409 = vsel %vm230, %v379, 0
        %411 = vmatpush.xpose.msra.mxu0 0.0
        %412 = vmatpush.xpose.msra.mxu0 0.0
        %413 = vmatpush.xpose.msra.mxu0 0.0
        %414 = vmatpush.xpose.msra.mxu0 0.0
        %415 = vmatpush.xpose.msra.mxu0 0.0
        %416 = vmatpush.xpose.msra.mxu0 0.0
        %417 = vmatpush.xpose.msra.mxu0 0.0
        %418 = vmatpush.xpose.msra.mxu0 0.0
        %419 = vmatpush.xpose.msra.mxu0 0.0
        %420 = vmatpush.xpose.msra.mxu0 0.0
        %421 = vmatpush.xpose.msra.mxu0 0.0
        %422 = vmatpush.xpose.msra.mxu0 0.0
        %423 = vmatpush.xpose.msra.mxu0 0.0
        %424 = vmatpush.xpose.msra.mxu0 0.0
        %425 = vmatpush.xpose.msra.mxu0 0.0
        %426 = vmatpush.xpose.msra.mxu0 %v409
        %427 = vmatmul.f32.gmra.mxu0 %v406
        %v428 = vpop.f32.mrf.mxu0
        %v429 = vadd.f32 0.0, %v428
        %430 = vdwg.mxu0
        %vm431 = vcmask 64512
        %v432 = vsel %vm431, %v429, -inf
        %433 = vmax.xlane.f32.xlu0 %v432
        %v434 = vpop.xlane.xlu0 %433
        %v435 = vsub.f32 %v429, %v434
        %v436 = vmul.f32 %v435, 1.442695
        %v437 = vpow.pop %v436
        %v438 = vsel %vm431, %v437, 0.0
        %439 = vadd.xlane.f32.xlu0 %v438
        %v440 = vpop.xlane.xlu0 %439
        %v441 = vrcp.pop %v440
        %v442 = vmul.f32 %v440, %v441
        %v443 = vsub.f32 1.0, %v442
        %v444 = vmul.f32 %v441, %v443
        %v445 = vadd.f32 %v441, %v444
        %vm446 = vweird.f32 %v440
        %vm447 = vweird.f32 %v441
        %vm448 = vmor %vm446, %vm447
        %v449 = vsel %vm448, %v441, %v445
        %v450 = vand.u32 2147483647, %v440
        %vm451 = vcmp.eq.f32.partialorder %v450, 8.507059e+37
        %v452 = vand.u32 %v440, 2147483648
        %v453 = vor.u32 1.1754944e-38, %v452
        %v454 = vsel %vm451, %v453, %v449
        %v455 = vmul.f32 %v437, %v454
        %v457 = vsel %vm431, %v455, 0
        %459 = vmatpush.msra.mxu0 0.0
        %460 = vmatpush.msra.mxu0 0.0
        %461 = vmatpush.msra.mxu0 0.0
        %462 = vmatpush.msra.mxu0 0.0
        %463 = vmatpush.msra.mxu0 0.0
        %464 = vmatpush.msra.mxu0 0.0
        %465 = vmatpush.msra.mxu0 0.0
        %466 = vmatpush.msra.mxu0 0.0
        %467 = vmatpush.msra.mxu0 0.0
        %468 = vmatpush.msra.mxu0 0.0
        %469 = vmatpush.msra.mxu0 0.0
        %470 = vmatpush.msra.mxu0 0.0
        %471 = vmatpush.msra.mxu0 0.0
        %472 = vmatpush.msra.mxu0 0.0
        %473 = vmatpush.msra.mxu0 0.0
        %474 = vmatpush.msra.mxu0 %v403
        %475 = vmatmul.f32.gmra.mxu0 %v457
        %v476 = vpop.f32.mrf.mxu0
        %v477 = vadd.f32 0.0, %v476
        %478 = vdwg.mxu0
        %v479 = vperm.slane %v229, 3
        %v481 = vsel %vm230, %v477, 0
        %483 = vmatpush.msra.mxu0 0.0
        %484 = vmatpush.msra.mxu0 0.0
        %485 = vmatpush.msra.mxu0 0.0
        %486 = vmatpush.msra.mxu0 0.0
        %487 = vmatpush.msra.mxu0 0.0
        %488 = vmatpush.msra.mxu0 0.0
        %489 = vmatpush.msra.mxu0 0.0
        %490 = vmatpush.msra.mxu0 0.0
        %491 = vmatpush.msra.mxu0 0.0
        %492 = vmatpush.msra.mxu0 0.0
        %493 = vmatpush.msra.mxu0 0.0
        %494 = vmatpush.msra.mxu0 0.0
        %495 = vmatpush.msra.mxu0 0.0
        %496 = vmatpush.msra.mxu0 0.0
        %497 = vmatpush.msra.mxu0 %v220
        %498 = vmatpush.msra.mxu0 %v219
        %499 = vmatmul.f32.gmra.mxu0 %v481
        %v500 = vpop.f32.mrf.mxu0
        %v501 = vadd.f32 %v479, %v500
        %502 = vdwg.mxu0
        %503 = vmatpush.msra.mxu0 0.0
        %504 = vmatpush.msra.mxu0 0.0
        %505 = vmatpush.msra.mxu0 0.0
        %506 = vmatpush.msra.mxu0 0.0
        %507 = vmatpush.msra.mxu0 0.0
        %508 = vmatpush.msra.mxu0 0.0
        %509 = vmatpush.msra.mxu0 0.0
        %510 = vmatpush.msra.mxu0 0.0
        %511 = vmatpush.msra.mxu0 0.0
        %512 = vmatpush.msra.mxu0 0.0
        %513 = vmatpush.msra.mxu0 0.0
        %514 = vmatpush.msra.mxu0 0.0
        %515 = vmatpush.msra.mxu0 %v228
        %516 = vmatpush.msra.mxu0 %v227
        %517 = vmatpush.msra.mxu0 %v226
        %518 = vmatpush.msra.mxu0 %v225
        %519 = vmatmul.f32.gmra.mxu0 %v256
        %v520 = vpop.f32.mrf.mxu0
        %v521 = vadd.f32 0.0, %v520
        %522 = vdwg.mxu0
        %v524 = vsel %vm254, %v501, 0
        %526 = vmatpush.msra.mxu0 0.0
        %527 = vmatpush.msra.mxu0 0.0
        %528 = vmatpush.msra.mxu0 0.0
        %529 = vmatpush.msra.mxu0 0.0
        %530 = vmatpush.msra.mxu0 0.0
        %531 = vmatpush.msra.mxu0 0.0
        %532 = vmatpush.msra.mxu0 0.0
        %533 = vmatpush.msra.mxu0 0.0
        %534 = vmatpush.msra.mxu0 0.0
        %535 = vmatpush.msra.mxu0 0.0
        %536 = vmatpush.msra.mxu0 0.0
        %537 = vmatpush.msra.mxu0 0.0
        %538 = vmatpush.msra.mxu0 %v224
        %539 = vmatpush.msra.mxu0 %v223
        %540 = vmatpush.msra.mxu0 %v222
        %541 = vmatpush.msra.mxu0 %v221
        %542 = vmatmul.f32.gmra.mxu0 %v524
        %v543 = vpop.f32.mrf.mxu0
        %v544 = vadd.f32 %v521, %v543
        %545 = vdwg.mxu0
        %v546 = vperm.slane %v229, 4
        %v547 = vadd.f32 %v544, %v546
        %v548 = vxor.u32 %v547, 2147483648
        %v549 = vmul.f32 %v548, 1.442695
        %v550 = vpow.pop %v549
        %v551 = vadd.f32 %v550, 1.0
        %v552 = vrcp.pop %v551
        %v553 = vmul.f32 %v551, %v552
        %v554 = vsub.f32 1.0, %v553
        %v555 = vmul.f32 %v552, %v554
        %v556 = vadd.f32 %v552, %v555
        %vm557 = vweird.f32 %v551
        %vm558 = vweird.f32 %v552
        %vm559 = vmor %vm557, %vm558
        %v560 = vsel %vm559, %v552, %v556
        %v561 = vand.u32 2147483647, %v551
        %vm562 = vcmp.eq.f32.partialorder %v561, 8.507059e+37
        %v563 = vand.u32 %v551, 2147483648
        %v564 = vor.u32 1.1754944e-38, %v563
        %v565 = vsel %vm562, %v564, %v560
        %v566 = vmul.f32 1.0, %v565
        %v567 = vmul.f32 %v566, %v501
        %v568 = vadd.f32 %v205, %v567
        %v569 = vsel %vm254, %v568, 0.0
        %570 = vadd.xlane.f32.xlu0 %v569
        %v571 = vpop.xlane.xlu0 %570
        %v572 = vrcp.pop 32.0
        %v573 = vmul.f32 32.0, %v572
        %v574 = vsub.f32 1.0, %v573
        %v575 = vmul.f32 %v572, %v574
        %v576 = vadd.f32 %v572, %v575
        %vm577 = vweird.f32 %v572
        %v578 = vsel %vm577, %v572, %v576
        %v579 = vmul.f32 %v571, %v578
        %v580 = vsub.f32 %v568, %v579
        %v581 = vmul.f32 %v580, %v580
        %v582 = vsel %vm254, %v581, 0.0
        %583 = vadd.xlane.f32.xlu0 %v582
        %v584 = vpop.xlane.xlu0 %583
        %v585 = vmul.f32 %v584, %v578
        %v586 = vadd.f32 %v585, 1e-05
        %v587 = vrsqrt.pop %v586
        %v588 = vmul.f32 %v587, %v586
        %v589 = vmul.f32 %v588, %v587
        %v590 = vmul.f32 0.5, %v589
        %v591 = vsub.f32 1.5, %v590
        %v592 = vmul.f32 %v587, %v591
        %vm593 = vweird.f32 %v586
        %vm594 = vweird.f32 %v587
        %vm595 = vmor %vm593, %vm594
        %v596 = vsel %vm595, %v587, %v592
        %v597 = vmul.f32 %v580, %v596
        %v598 = vperm.slane %v229, 5
        %v599 = vmul.f32 %v597, %v598
        %v600 = vperm.slane %v229, 6
        %v601 = vadd.f32 %v599, %v600
        %602 = vst.msk [vmem:[%s194] sm:$0xff] %vm254, %v601
        %s603 = sand.u32 %s99, 1
        %s604 = scalar_lea.sflag [#allocation4], %s603
        %s605 = sand.u32 %s99, 1
        %s606 = smul.addr %s605, 8
        %s607 = scalar_lea.vmem [#allocation5], %s606
        // Predicated region
        $region37: #{tpu_custom_call.1} parent=31 // pred_check
          %p608 = pneg %p109
        $region38: #{tpu_custom_call.1} parent=31 // pred_check_branch
          %610 = sbr.rel (%p608) target = $region40
        $region39: #{tpu_custom_call.1} parent=31 // pred_region
          %612 = vsyncadd %s604, 0
          %s613 = smul.addr %s18, 8
          %s614 = scalar_lea.hbm %s3, %s613
          %s616 = sshll.u32 %s607, 4
          %s617 = int_to_ptr.vmem [resolvable:$true] %s616
          %s618 = sshll.u32 %s614, 4
          %s619 = int_to_ptr.hbm [resolvable:$true] %s618
          %621 = dma.vmem_to_hbm [thread:$0]  %s617, 128, %s619, %s604
        $region40: #{tpu_custom_call.1} parent=31 // pred_fallthru
          _
      $region32: #{tpu_custom_call.1} parent=5 // pred_fallthru
        _
      %p622 = scmp.le.s32.totalorder 2, %s13
      // Predicated region
      $region41: #{tpu_custom_call.1} parent=5 // pred_check
        %p623 = pneg %p622
      $region42: #{tpu_custom_call.1} parent=5 // pred_check_branch
        %625 = sbr.rel (%p623) target = $region44
      $region43: #{tpu_custom_call.1} parent=5 // pred_region
        %s626 = ssub.s32 %s13, 2
        // Predicated region
        $region45: #{tpu_custom_call.1} parent=43 // pred_check
          %p627 = pneg %p115
        $region46: #{tpu_custom_call.1} parent=43 // pred_check_branch
          %629 = sbr.rel (%p627) target = $region48
        $region47: #{tpu_custom_call.1} parent=43 // pred_region
          %s630 = sand.u32 %s100, 1
          %s631 = scalar_lea.sflag [#allocation4], %s630
          %s632 = sand.u32 %s100, 1
          %s633 = smul.addr %s632, 8
          %s634 = scalar_lea.vmem [#allocation5], %s633
          %636 = dma.done %s631, 128
        $region48: #{tpu_custom_call.1} parent=43 // pred_fallthru
          _
      $region44: #{tpu_custom_call.1} parent=5 // pred_fallthru
        _
    $region6: #{tpu_custom_call.1} parent=1 // loop_footer
      %s17 = sadd.s32 1, %s13
    $region7: #{tpu_custom_call.1} parent=1 // loop_footer_branch
      %12 = sbr.rel target = $region3
    $region8: #{tpu_custom_call.1} parent=1 // loop_exit
      _
    %637 = vsyncpa [#allocation3], 1
    %s638 = scalar_lea.sflag [#allocation3], 1
    %639 = vsyncpa %s638, 1
    %640 = vsyncpa [#allocation4], 1
    %s641 = scalar_lea.sflag [#allocation4], 1
    %642 = vsyncpa %s641, 1

</llo_original>
